<compile_context>
chip_gen: v6e
topology: v6e:2x2x1
jax: 0.10.0
libtpu: 0.0.40
codegen_flags: <defaults>
</compile_context>

<pallas_src>
import jax
import jax.numpy as jnp
from jax.experimental import pallas as pl
from jax.experimental.pallas import tpu as pltpu


_LANE = 1024            # lane width: multiple of 128 -> lane-dense vst, no masking
_MAX_TILE_ROWS = 512    # 512 x 1024 f32 = 2 MiB/tile; in+out double-buffered = 8 MiB
_PALLAS_MIN_ELEMS = 8 * 128   # below one (8,128) tile, launch overhead dominates


def _bpg_roundtrip_kernel(x_ref, o_ref):
    # x in [-1, 1] (float32)
    x = x_ref[...]
    # step 1: de-normalize to [0, 255]
    lr255 = (x + 1.0) * 127.5
    # step 2: quantize exactly as the uint8 PNG write would (round + clamp)
    q = jnp.clip(jnp.round(lr255), 0.0, 255.0)
    # step 3:
    # TODO(synk): external bpgenc/bpgdec subprocess (lossy BPG codec) has no Pallas
    # equivalent; the quantized uint8 values pass through unchanged.
    # step 4: re-normalize decoded uint8 values back to [-1, 1]
    o_ref[...] = q * (1.0 / 127.5) - 1.0


def _roundtrip_ref(x):
    """Plain-JAX reference / small-input fallback for the quantize round trip."""
    return jnp.clip(jnp.round((x + 1.0) * 127.5), 0.0, 255.0) * (1.0 / 127.5) - 1.0


@jax.jit
def _roundtrip_pallas(lr):
    orig_shape = lr.shape
    total = lr.size
    flat = lr.reshape(total).astype(jnp.float32)

    # Lane-dense slab: (rows, _LANE), rows padded to a multiple of the tile height.
    rows = pl.cdiv(total, _LANE)
    tile_rows = min(_MAX_TILE_ROWS, ((rows + 7) // 8) * 8)   # (8,*)-aligned tile height
    rows_padded = ((rows + tile_rows - 1) // tile_rows) * tile_rows
    padded_len = rows_padded * _LANE

    if padded_len != total:
        flat = jnp.pad(flat, (0, padded_len - total))
    x2d = flat.reshape(rows_padded, _LANE)

    grid = (rows_padded // tile_rows,)
    out2d = pl.pallas_call(
        _bpg_roundtrip_kernel,
        out_shape=jax.ShapeDtypeStruct((rows_padded, _LANE), jnp.float32),
        grid=grid,
        in_specs=[pl.BlockSpec((tile_rows, _LANE), lambda i: (i, 0))],
        out_specs=pl.BlockSpec((tile_rows, _LANE), lambda i: (i, 0)),
        input_output_aliases={0: 0},
        compiler_params=pltpu.CompilerParams(
            dimension_semantics=("parallel",),
        ),
    )(x2d)

    return out2d.reshape(padded_len)[:total].reshape(orig_shape)


def compress_bpg(lr: jax.Array, idx: int = 0, q: int = 16):
    """JAX/Pallas equivalent of Compress_bpg.forward (BPG codec replaced by identity).

    Args:
      lr:  float array of shape [N, C, H, W] with values in [-1, 1].
      idx: unused (file-naming index in the original module).
      q:   unused (BPG quality parameter consumed by the external encoder).
    Returns:
      (lr_roundtrip, bits): lr_roundtrip has the same shape as `lr` (float32);
      bits is the raw uint8 byte count of the image (stand-in for the .bpg size).
    """
    del idx, q  # only meaningful for the external codec, which is untranslatable
    lr = jnp.asarray(lr, dtype=jnp.float32)
    if lr.size < _PALLAS_MIN_ELEMS:
        out = _roundtrip_ref(lr)        # tiny image: fused XLA beats kernel launch
    else:
        out = _roundtrip_pallas(lr)
    # TODO(synk): true `bits` is the size of the bpgenc-compressed file; report raw bytes.
    bits = int(lr.size)
    return out, bits


if __name__ == "__main__":
    key = jax.random.PRNGKey(0)
    # The module writes a single 3-channel image, so N=1, C=3; small spatial size.
    N, C, H, W = 1, 3, 64, 64
    lr = jax.random.uniform(key, (N, C, H, W), dtype=jnp.float32, minval=-1.0, maxval=1.0)

    out, bits = compress_bpg(lr)
    out = jax.block_until_ready(out)

    ref = _roundtrip_ref(lr)
    assert out.shape == (N, C, H, W)
    assert out.dtype == jnp.float32
    assert float(jnp.max(jnp.abs(out - ref))) < 1e-5
    assert bits == N * C * H * W

    print("KERNEL_OK")
</pallas_src>

<mosaic_0001>
module attributes {stable_mosaic.version = 11 : i64} {
  func.func @_bpg_roundtrip_kernel(%arg0: i32, %arg1: memref<16x1024xf32, #tpu.memory_space<vmem>>, %arg2: memref<16x1024xf32, #tpu.memory_space<vmem>>) attributes {dimension_semantics = [#tpu.dimension_semantics<parallel>], iteration_bounds = array<i64: 1>, scalar_prefetch = 0 : i64, scratch_operands = 0 : i64, tpu.core_type = #tpu.core_type<tc>, window_params = [{transform_indices = @transform_0, window_bounds = array<i64: 16, 1024>}, {transform_indices = @transform_1, window_bounds = array<i64: 16, 1024>}]} {
    %c0 = arith.constant 0 : index
    %c0_0 = arith.constant 0 : index
    %0 = vector.load %arg1[%c0, %c0_0] : memref<16x1024xf32, #tpu.memory_space<vmem>>, vector<16x1024xf32>
    %cst = arith.constant 1.000000e+00 : f32
    %1 = vector.broadcast %cst : f32 to vector<16x1024xf32>
    %2 = arith.addf %0, %1 : vector<16x1024xf32>
    %cst_1 = arith.constant 1.275000e+02 : f32
    %3 = vector.broadcast %cst_1 : f32 to vector<16x1024xf32>
    %4 = arith.mulf %2, %3 : vector<16x1024xf32>
    %5 = math.roundeven %4 : vector<16x1024xf32>
    %cst_2 = arith.constant 0.000000e+00 : f32
    %cst_3 = arith.constant 2.550000e+02 : f32
    %6 = vector.broadcast %cst_2 : f32 to vector<16x1024xf32>
    %7 = arith.maximumf %6, %5 : vector<16x1024xf32>
    %8 = vector.broadcast %cst_3 : f32 to vector<16x1024xf32>
    %9 = arith.minimumf %8, %7 : vector<16x1024xf32>
    %cst_4 = arith.constant 0.00784313772 : f32
    %10 = vector.broadcast %cst_4 : f32 to vector<16x1024xf32>
    %11 = arith.mulf %9, %10 : vector<16x1024xf32>
    %cst_5 = arith.constant 1.000000e+00 : f32
    %12 = vector.broadcast %cst_5 : f32 to vector<16x1024xf32>
    %13 = arith.subf %11, %12 : vector<16x1024xf32>
    %c0_6 = arith.constant 0 : index
    %c0_7 = arith.constant 0 : index
    %14 = vector.load %arg2[%c0_6, %c0_7] : memref<16x1024xf32, #tpu.memory_space<vmem>>, vector<16x1024xf32>
    tpu.vector_store %arg2[%c0_6, %c0_7], %13 {strides = array<i32>} : memref<16x1024xf32, #tpu.memory_space<vmem>>, vector<16x1024xf32>,
    return
  }
  func.func @transform_0(%arg0: i32) -> (i32, i32) {
    %c0_i32 = arith.constant 0 : i32
    %c0_i32_0 = arith.constant 0 : i32
    return %arg0, %c0_i32 : i32, i32
  }
  func.func @transform_1(%arg0: i32) -> (i32, i32) {
    %c0_i32 = arith.constant 0 : i32
    %c0_i32_0 = arith.constant 0 : i32
    return %arg0, %c0_i32 : i32, i32
  }
}

</mosaic_0001>

<llo_original>
// kernel: _roundtrip_pallas.1
$region0: #{_roundtrip_pallas.1}
  #allocation0 [shape = 'u32[]', space=smem, size = 0x4, offset = 0x4, fixed_abs, tag = 'smem constant byte address 0x4 - core index']
  #allocation1 [shape = 'u32[144,128]{1,0:T(1,128)}', space=vmem, size = 0x12000, scoped, tag = 'internal scratch']
  %s0 = inlined_call_operand.vmem [shape: f32[16,1024], index: 0, kind: input, shape index: {}, may-alias: {0,1}]
  %s1 = inlined_call_operand.vmem [shape: f32[16,1024], index: 1, kind: output, shape index: {}, may-alias: {0,1}]
  %s2 = sld [smem:[#allocation0]]
  $region14: #{_roundtrip_pallas.1} parent=0
    _
  %s4 = ssub.s32 1, %s2
  %s5 = scalar_select 0, %s4, %s2
  // Predicated region
  $region2: #{_roundtrip_pallas.1} parent=0 // pred_check
    _
  $region3: #{_roundtrip_pallas.1} parent=0 // pred_check_branch
    %7 = sbr.rel (0) target = $region5
  $region4: #{_roundtrip_pallas.1} parent=0 // pred_region
    _
  $region5: #{_roundtrip_pallas.1} parent=0 // pred_fallthru
    _
  %v8 = vld [vmem:[%s0] sm:$0xff]
  %v9 = vld [vmem:[%s0 + $0x8] sm:$0xff]
  %v10 = vld [vmem:[%s0 + $0x10] sm:$0xff]
  %v11 = vld [vmem:[%s0 + $0x18] sm:$0xff]
  %v12 = vld [vmem:[%s0 + $0x20] sm:$0xff]
  %v13 = vld [vmem:[%s0 + $0x28] sm:$0xff]
  %v14 = vld [vmem:[%s0 + $0x30] sm:$0xff]
  %v15 = vld [vmem:[%s0 + $0x38] sm:$0xff]
  %v16 = vld [vmem:[%s0 + $0x40] sm:$0xff]
  %v17 = vld [vmem:[%s0 + $0x48] sm:$0xff]
  %v18 = vld [vmem:[%s0 + $0x50] sm:$0xff]
  %v19 = vld [vmem:[%s0 + $0x58] sm:$0xff]
  %v20 = vld [vmem:[%s0 + $0x60] sm:$0xff]
  %v21 = vld [vmem:[%s0 + $0x68] sm:$0xff]
  %v22 = vld [vmem:[%s0 + $0x70] sm:$0xff]
  %v23 = vld [vmem:[%s0 + $0x78] sm:$0xff]
  %v24 = vadd.f32 %v8, 1.0
  %v25 = vadd.f32 %v9, 1.0
  %v26 = vadd.f32 %v10, 1.0
  %v27 = vadd.f32 %v11, 1.0
  %v28 = vadd.f32 %v12, 1.0
  %v29 = vadd.f32 %v13, 1.0
  %v30 = vadd.f32 %v14, 1.0
  %v31 = vadd.f32 %v15, 1.0
  %v32 = vadd.f32 %v16, 1.0
  %v33 = vadd.f32 %v17, 1.0
  %v34 = vadd.f32 %v18, 1.0
  %v35 = vadd.f32 %v19, 1.0
  %v36 = vadd.f32 %v20, 1.0
  %v37 = vadd.f32 %v21, 1.0
  %v38 = vadd.f32 %v22, 1.0
  %v39 = vadd.f32 %v23, 1.0
  %v40 = vmul.f32 %v24, 127.5
  %v41 = vmul.f32 %v25, 127.5
  %v42 = vmul.f32 %v26, 127.5
  %v43 = vmul.f32 %v27, 127.5
  %v44 = vmul.f32 %v28, 127.5
  %v45 = vmul.f32 %v29, 127.5
  %v46 = vmul.f32 %v30, 127.5
  %v47 = vmul.f32 %v31, 127.5
  %v48 = vmul.f32 %v32, 127.5
  %v49 = vmul.f32 %v33, 127.5
  %v50 = vmul.f32 %v34, 127.5
  %v51 = vmul.f32 %v35, 127.5
  %v52 = vmul.f32 %v36, 127.5
  %v53 = vmul.f32 %v37, 127.5
  %v54 = vmul.f32 %v38, 127.5
  %v55 = vmul.f32 %v39, 127.5
  %v56 = vround.ne.pseudo %v40
  %v57 = vround.ne.pseudo %v41
  %v58 = vround.ne.pseudo %v42
  %v59 = vround.ne.pseudo %v43
  %v60 = vround.ne.pseudo %v44
  %v61 = vround.ne.pseudo %v45
  %v62 = vround.ne.pseudo %v46
  %v63 = vround.ne.pseudo %v47
  %v64 = vround.ne.pseudo %v48
  %v65 = vround.ne.pseudo %v49
  %v66 = vround.ne.pseudo %v50
  %v67 = vround.ne.pseudo %v51
  %v68 = vround.ne.pseudo %v52
  %v69 = vround.ne.pseudo %v53
  %v70 = vround.ne.pseudo %v54
  %v71 = vround.ne.pseudo %v55
  %v72 = vmax.f32 %v56, 0.0
  %v73 = vmax.f32 %v57, 0.0
  %v74 = vmax.f32 %v58, 0.0
  %v75 = vmax.f32 %v59, 0.0
  %v76 = vmax.f32 %v60, 0.0
  %v77 = vmax.f32 %v61, 0.0
  %v78 = vmax.f32 %v62, 0.0
  %v79 = vmax.f32 %v63, 0.0
  %v80 = vmax.f32 %v64, 0.0
  %v81 = vmax.f32 %v65, 0.0
  %v82 = vmax.f32 %v66, 0.0
  %v83 = vmax.f32 %v67, 0.0
  %v84 = vmax.f32 %v68, 0.0
  %v85 = vmax.f32 %v69, 0.0
  %v86 = vmax.f32 %v70, 0.0
  %v87 = vmax.f32 %v71, 0.0
  %v88 = vmin.f32 %v72, 255.0
  %v89 = vmin.f32 %v73, 255.0
  %v90 = vmin.f32 %v74, 255.0
  %v91 = vmin.f32 %v75, 255.0
  %v92 = vmin.f32 %v76, 255.0
  %v93 = vmin.f32 %v77, 255.0
  %v94 = vmin.f32 %v78, 255.0
  %v95 = vmin.f32 %v79, 255.0
  %v96 = vmin.f32 %v80, 255.0
  %v97 = vmin.f32 %v81, 255.0
  %v98 = vmin.f32 %v82, 255.0
  %v99 = vmin.f32 %v83, 255.0
  %v100 = vmin.f32 %v84, 255.0
  %v101 = vmin.f32 %v85, 255.0
  %v102 = vmin.f32 %v86, 255.0
  %v103 = vmin.f32 %v87, 255.0
  %v104 = vmul.f32 %v88, 0.007843138
  %v105 = vmul.f32 %v89, 0.007843138
  %v106 = vmul.f32 %v90, 0.007843138
  %v107 = vmul.f32 %v91, 0.007843138
  %v108 = vmul.f32 %v92, 0.007843138
  %v109 = vmul.f32 %v93, 0.007843138
  %v110 = vmul.f32 %v94, 0.007843138
  %v111 = vmul.f32 %v95, 0.007843138
  %v112 = vmul.f32 %v96, 0.007843138
  %v113 = vmul.f32 %v97, 0.007843138
  %v114 = vmul.f32 %v98, 0.007843138
  %v115 = vmul.f32 %v99, 0.007843138
  %v116 = vmul.f32 %v100, 0.007843138
  %v117 = vmul.f32 %v101, 0.007843138
  %v118 = vmul.f32 %v102, 0.007843138
  %v119 = vmul.f32 %v103, 0.007843138
  %v120 = vsub.f32 %v104, 1.0
  %v121 = vsub.f32 %v105, 1.0
  %v122 = vsub.f32 %v106, 1.0
  %v123 = vsub.f32 %v107, 1.0
  %v124 = vsub.f32 %v108, 1.0
  %v125 = vsub.f32 %v109, 1.0
  %v126 = vsub.f32 %v110, 1.0
  %v127 = vsub.f32 %v111, 1.0
  %v128 = vsub.f32 %v112, 1.0
  %v129 = vsub.f32 %v113, 1.0
  %v130 = vsub.f32 %v114, 1.0
  %v131 = vsub.f32 %v115, 1.0
  %v132 = vsub.f32 %v116, 1.0
  %v133 = vsub.f32 %v117, 1.0
  %v134 = vsub.f32 %v118, 1.0
  %v135 = vsub.f32 %v119, 1.0
  %136 = vst [vmem:[%s1] sm:$0xff] %v120
  %137 = vst [vmem:[%s1 + $0x8] sm:$0xff] %v121
  %138 = vst [vmem:[%s1 + $0x10] sm:$0xff] %v122
  %139 = vst [vmem:[%s1 + $0x18] sm:$0xff] %v123
  %140 = vst [vmem:[%s1 + $0x20] sm:$0xff] %v124
  %141 = vst [vmem:[%s1 + $0x28] sm:$0xff] %v125
  %142 = vst [vmem:[%s1 + $0x30] sm:$0xff] %v126
  %143 = vst [vmem:[%s1 + $0x38] sm:$0xff] %v127
  %144 = vst [vmem:[%s1 + $0x40] sm:$0xff] %v128
  %145 = vst [vmem:[%s1 + $0x48] sm:$0xff] %v129
  %146 = vst [vmem:[%s1 + $0x50] sm:$0xff] %v130
  %147 = vst [vmem:[%s1 + $0x58] sm:$0xff] %v131
  %148 = vst [vmem:[%s1 + $0x60] sm:$0xff] %v132
  %149 = vst [vmem:[%s1 + $0x68] sm:$0xff] %v133
  %150 = vst [vmem:[%s1 + $0x70] sm:$0xff] %v134
  %151 = vst [vmem:[%s1 + $0x78] sm:$0xff] %v135
  // Predicated region
  $region6: #{_roundtrip_pallas.1} parent=0 // pred_check
    _
  $region7: #{_roundtrip_pallas.1} parent=0 // pred_check_branch
    %153 = sbr.rel (0) target = $region9
  $region8: #{_roundtrip_pallas.1} parent=0 // pred_region
    _
  $region9: #{_roundtrip_pallas.1} parent=0 // pred_fallthru
    _
  // Predicated region
  $region10: #{_roundtrip_pallas.1} parent=0 // pred_check
    _
  $region11: #{_roundtrip_pallas.1} parent=0 // pred_check_branch
    %155 = sbr.rel (0) target = $region13
  $region12: #{_roundtrip_pallas.1} parent=0 // pred_region
    _
  $region13: #{_roundtrip_pallas.1} parent=0 // pred_fallthru
    _

</llo_original>
